<compile_context>
chip_gen: v7x
topology: tpu7x:2x2x1
jax: 0.10.0
libtpu: 0.0.40
codegen_flags: <defaults>
</compile_context>

<pallas_src>
import jax
import jax.numpy as jnp
from jax.experimental import pallas as pl
from jax.experimental.pallas import tpu as pltpu


# --------------------------------------------------------------------------- #
# Kernel: both HGNNPConv layers fused, everything resident in VMEM.
# --------------------------------------------------------------------------- #
def _hgnnp_fused_kernel(x_ref, g_ref, w1_ref, b1_ref, w2_ref, b2_ref, o_ref):
    """Fused two-layer HGNNP forward.

    x_ref  : [N,  C0p] bf16   vertex features (feature dim padded to 128)
    g_ref  : [N,  N  ] bf16   combined aggregation matrix D_v^{-1} H D_e^{-1} H^T
    w1_ref : [C0p,C1p] bf16   layer-1 weight (zero padded)
    b1_ref : [1,  C1p] f32    layer-1 bias   (zero padded)
    w2_ref : [C1p,C2p] bf16   layer-2 weight (zero padded)
    b2_ref : [1,  C2p] f32    layer-2 bias   (zero padded)
    o_ref  : [N,  C2p] f32    output logits  (lane-dense, sliced in the wrapper)
    """
    bf16 = jnp.bfloat16

    # ---- layer 1 (lkc1): theta -> aggregate -> ReLU (dropout = identity in eval) ----
    y1 = jnp.dot(x_ref[...], w1_ref[...], preferred_element_type=jnp.float32)
    y1 = y1 + b1_ref[...]
    v1 = jnp.dot(g_ref[...], y1.astype(bf16), preferred_element_type=jnp.float32)
    v1 = jnp.maximum(v1, 0.0)

    # ---- layer 2 (lkc2, is_last): theta -> aggregate (no activation) ----
    y2 = jnp.dot(v1.astype(bf16), w2_ref[...], preferred_element_type=jnp.float32)
    y2 = y2 + b2_ref[...]
    v2 = jnp.dot(g_ref[...], y2.astype(bf16), preferred_element_type=jnp.float32)

    o_ref[...] = v2.astype(o_ref.dtype)


# --------------------------------------------------------------------------- #
# Wrapper / glue
# --------------------------------------------------------------------------- #
def _round_up(v, m):
    return (v + m - 1) // m * m


def _pad2(a, rows, cols):
    return jnp.pad(a, ((0, rows - a.shape[0]), (0, cols - a.shape[1])))


def hgnnp_forward(x, h, params):
    """Full HGNNP forward: both HGNNPConv layers fused into one Pallas kernel call."""
    w1, b1, w2, b2 = params
    n, cin = x.shape
    hid = w1.shape[1]
    ncls = w2.shape[1]

    # Combined, layer-independent aggregation matrix (plain-JAX glue, computed once):
    #   G = D_v^{-1} H D_e^{-1} H^T   [N, N], row-stochastic ("mean" v2v aggregation).
    # NOTE: degree clamp to 1.0 guards empty rows/cols (deviates from dhg only for
    #       isolated vertices / empty hyperedges, which the test construction avoids).
    d_e = jnp.maximum(h.sum(axis=0), 1.0)            # [M] hyperedge degrees
    d_v = jnp.maximum(h.sum(axis=1), 1.0)            # [N] vertex degrees
    g = (h / d_v[:, None]) @ (h / d_e[None, :]).T    # [N, N]

    # Lane-dense padding: feature dims -> multiples of 128, vertex dim -> multiple of 8.
    LANE, SUB = 128, 8
    n_p = _round_up(n, SUB)
    c0p = _round_up(cin, LANE)
    c1p = _round_up(hid, LANE)
    c2p = _round_up(ncls, LANE)

    bf16 = jnp.bfloat16
    x_p = _pad2(x, n_p, c0p).astype(bf16)
    g_p = _pad2(g, n_p, n_p).astype(bf16)
    w1_p = _pad2(w1, c0p, c1p).astype(bf16)
    w2_p = _pad2(w2, c1p, c2p).astype(bf16)
    b1_p = _pad2(b1, 1, c1p).astype(jnp.float32)
    b2_p = _pad2(b2, 1, c2p).astype(jnp.float32)

    vmem = pl.BlockSpec(memory_space=pltpu.MemorySpace.VMEM)
    out = pl.pallas_call(
        _hgnnp_fused_kernel,
        out_shape=jax.ShapeDtypeStruct((n_p, c2p), jnp.float32),
        in_specs=[vmem, vmem, vmem, vmem, vmem, vmem],
        out_specs=vmem,
    )(x_p, g_p, w1_p, b1_p, w2_p, b2_p)

    return out[:n, :ncls]


def init_params(key, in_channels, hid_channels, num_classes):
    """Deterministic PyTorch-Linear-like init (uniform +/- 1/sqrt(fan_in))."""
    k1, k2, k3, k4 = jax.random.split(key, 4)
    lim1 = 1.0 / jnp.sqrt(in_channels)
    lim2 = 1.0 / jnp.sqrt(hid_channels)
    w1 = jax.random.uniform(k1, (in_channels, hid_channels), jnp.float32, -lim1, lim1)
    b1 = jax.random.uniform(k2, (1, hid_channels), jnp.float32, -lim1, lim1)
    w2 = jax.random.uniform(k3, (hid_channels, num_classes), jnp.float32, -lim2, lim2)
    b2 = jax.random.uniform(k4, (1, num_classes), jnp.float32, -lim2, lim2)
    return w1, b1, w2, b2


def _reference(x, h, params):
    """Pure-JAX reference mirroring the kernel's bf16-operand / f32-accum math."""
    w1, b1, w2, b2 = params
    bf16, f32 = jnp.bfloat16, jnp.float32
    d_e = jnp.maximum(h.sum(0), 1.0)
    d_v = jnp.maximum(h.sum(1), 1.0)
    g = ((h / d_v[:, None]) @ (h / d_e[None, :]).T).astype(bf16)
    y1 = jnp.dot(x.astype(bf16), w1.astype(bf16), preferred_element_type=f32) + b1
    v1 = jnp.maximum(jnp.dot(g, y1.astype(bf16), preferred_element_type=f32), 0.0)
    y2 = jnp.dot(v1.astype(bf16), w2.astype(bf16), preferred_element_type=f32) + b2
    return jnp.dot(g, y2.astype(bf16), preferred_element_type=f32)


if __name__ == "__main__":
    key = jax.random.PRNGKey(0)
    k_x, k_h, k_p = jax.random.split(key, 3)

    # Small, module-consistent shapes.
    num_vertices = 16      # N
    num_edges = 8          # M hyperedges
    in_channels = 16
    hid_channels = 32
    num_classes = 8

    # Vertex features [N, Cin].
    x = jax.random.normal(k_x, (num_vertices, in_channels), jnp.float32)

    # Dense incidence matrix H [N, M]: random membership with guaranteed non-empty
    # rows/columns (each vertex joins edge (v mod M); each edge gets vertex (e mod N)).
    h_rand = (jax.random.uniform(k_h, (num_vertices, num_edges)) < 0.3).astype(jnp.float32)
    row_fix = jax.nn.one_hot(jnp.arange(num_vertices) % num_edges, num_edges, dtype=jnp.float32)
    col_fix = jax.nn.one_hot(jnp.arange(num_edges) % num_vertices, num_vertices,
                             dtype=jnp.float32).T
    h = jnp.clip(h_rand + row_fix + col_fix, 0.0, 1.0)

    params = init_params(k_p, in_channels, hid_channels, num_classes)

    fwd = jax.jit(hgnnp_forward)
    out = fwd(x, h, params)
    out = jax.block_until_ready(out)
    assert out.shape == (num_vertices, num_classes)

    # Correctness: match a pure-JAX reference with identical bf16/f32 precision.
    ref = _reference(x, h, params)
    assert jnp.allclose(out, ref, atol=1e-3, rtol=1e-3), (
        f"max abs diff {float(jnp.max(jnp.abs(out - ref)))}")

    print("KERNEL_OK")
</pallas_src>

<mosaic_0001>
module attributes {stable_mosaic.version = 11 : i64} {
  func.func @_hgnnp_fused_kernel(%arg0: memref<16x128xbf16, #tpu.memory_space<vmem>>, %arg1: memref<16x16xbf16, #tpu.memory_space<vmem>>, %arg2: memref<128x128xbf16, #tpu.memory_space<vmem>>, %arg3: memref<1x128xf32, #tpu.memory_space<vmem>>, %arg4: memref<128x128xbf16, #tpu.memory_space<vmem>>, %arg5: memref<1x128xf32, #tpu.memory_space<vmem>>, %arg6: memref<16x128xf32, #tpu.memory_space<vmem>>) attributes {dimension_semantics = [], scalar_prefetch = 0 : i64, scratch_operands = 0 : i64, tpu.core_type = #tpu.core_type<tc>} {
    %c0 = arith.constant 0 : index
    %c0_0 = arith.constant 0 : index
    %0 = vector.load %arg0[%c0, %c0_0] : memref<16x128xbf16, #tpu.memory_space<vmem>>, vector<16x128xbf16>
    %c0_1 = arith.constant 0 : index
    %c0_2 = arith.constant 0 : index
    %1 = vector.load %arg2[%c0_1, %c0_2] : memref<128x128xbf16, #tpu.memory_space<vmem>>, vector<128x128xbf16>
    %cst = arith.constant dense<0.000000e+00> : vector<16x128xf32>
    %2 = tpu.matmul %0, %1, %cst {dimension_numbers = #tpu.dot_dimension_numbers<[1], [0], [0], [1], [0, 0, 1, 1], [], []>} : vector<16x128xbf16>, vector<128x128xbf16>, vector<16x128xf32> -> vector<16x128xf32>
    %c0_3 = arith.constant 0 : index
    %c0_4 = arith.constant 0 : index
    %3 = vector.load %arg3[%c0_3, %c0_4] : memref<1x128xf32, #tpu.memory_space<vmem>>, vector<1x128xf32>
    %4 = vector.broadcast %3 : vector<1x128xf32> to vector<16x128xf32>
    %5 = arith.addf %2, %4 : vector<16x128xf32>
    %c0_5 = arith.constant 0 : index
    %c0_6 = arith.constant 0 : index
    %6 = vector.load %arg1[%c0_5, %c0_6] : memref<16x16xbf16, #tpu.memory_space<vmem>>, vector<16x16xbf16>
    %7 = arith.truncf %5 : vector<16x128xf32> to vector<16x128xbf16>
    %cst_7 = arith.constant dense<0.000000e+00> : vector<16x128xf32>
    %8 = tpu.matmul %6, %7, %cst_7 {dimension_numbers = #tpu.dot_dimension_numbers<[1], [0], [0], [1], [0, 0, 1, 1], [], []>} : vector<16x16xbf16>, vector<16x128xbf16>, vector<16x128xf32> -> vector<16x128xf32>
    %cst_8 = arith.constant 0.000000e+00 : f32
    %9 = vector.broadcast %cst_8 : f32 to vector<16x128xf32>
    %10 = arith.maximumf %8, %9 : vector<16x128xf32>
    %11 = arith.truncf %10 : vector<16x128xf32> to vector<16x128xbf16>
    %c0_9 = arith.constant 0 : index
    %c0_10 = arith.constant 0 : index
    %12 = vector.load %arg4[%c0_9, %c0_10] : memref<128x128xbf16, #tpu.memory_space<vmem>>, vector<128x128xbf16>
    %cst_11 = arith.constant dense<0.000000e+00> : vector<16x128xf32>
    %13 = tpu.matmul %11, %12, %cst_11 {dimension_numbers = #tpu.dot_dimension_numbers<[1], [0], [0], [1], [0, 0, 1, 1], [], []>} : vector<16x128xbf16>, vector<128x128xbf16>, vector<16x128xf32> -> vector<16x128xf32>
    %c0_12 = arith.constant 0 : index
    %c0_13 = arith.constant 0 : index
    %14 = vector.load %arg5[%c0_12, %c0_13] : memref<1x128xf32, #tpu.memory_space<vmem>>, vector<1x128xf32>
    %15 = vector.broadcast %14 : vector<1x128xf32> to vector<16x128xf32>
    %16 = arith.addf %13, %15 : vector<16x128xf32>
    %c0_14 = arith.constant 0 : index
    %c0_15 = arith.constant 0 : index
    %17 = vector.load %arg1[%c0_14, %c0_15] : memref<16x16xbf16, #tpu.memory_space<vmem>>, vector<16x16xbf16>
    %18 = arith.truncf %16 : vector<16x128xf32> to vector<16x128xbf16>
    %cst_16 = arith.constant dense<0.000000e+00> : vector<16x128xf32>
    %19 = tpu.matmul %17, %18, %cst_16 {dimension_numbers = #tpu.dot_dimension_numbers<[1], [0], [0], [1], [0, 0, 1, 1], [], []>} : vector<16x16xbf16>, vector<16x128xbf16>, vector<16x128xf32> -> vector<16x128xf32>
    %c0_17 = arith.constant 0 : index
    %c0_18 = arith.constant 0 : index
    %20 = vector.load %arg6[%c0_17, %c0_18] : memref<16x128xf32, #tpu.memory_space<vmem>>, vector<16x128xf32>
    tpu.vector_store %arg6[%c0_17, %c0_18], %19 {strides = array<i32>} : memref<16x128xf32, #tpu.memory_space<vmem>>, vector<16x128xf32>,
    return
  }
}

</mosaic_0001>

<llo_original>
// kernel: hgnnp_forward.1
$region0: #{hgnnp_forward.1}
  #allocation0 [shape = 'u32[]', space=smem, size = 0x4, offset = 0x4, fixed_abs, tag = 'smem constant byte address 0x4 - core index']
  #allocation1 [shape = 'u32[144,128]{1,0:T(1,128)}', space=vmem, size = 0x12000, scoped, tag = 'internal scratch']
  %s0 = inlined_call_operand.vmem [shape: bf16[16,128], index: 0, kind: input, shape index: {}]
  %s1 = inlined_call_operand.vmem [shape: bf16[16,16], index: 1, kind: input, shape index: {}]
  %s2 = inlined_call_operand.vmem [shape: bf16[128,128], index: 2, kind: input, shape index: {}]
  %s3 = inlined_call_operand.vmem [shape: f32[1,128], index: 3, kind: input, shape index: {}]
  %s4 = inlined_call_operand.vmem [shape: bf16[128,128], index: 4, kind: input, shape index: {}]
  %s5 = inlined_call_operand.vmem [shape: f32[1,128], index: 5, kind: input, shape index: {}]
  %s6 = inlined_call_operand.vmem [shape: f32[16,128], index: 6, kind: output, shape index: {}]
  %s7 = sld [smem:[#allocation0]]
  $region34: #{hgnnp_forward.1} parent=0
    _
  %s9 = ssub.s32 1, %s7
  %s10 = scalar_select 0, %s9, %s7
  // Predicated region
  $region2: #{hgnnp_forward.1} parent=0 // pred_check
    _
  $region3: #{hgnnp_forward.1} parent=0 // pred_check_branch
    %12 = sbr.rel (0) target = $region5
  $region4: #{hgnnp_forward.1} parent=0 // pred_region
    _
  $region5: #{hgnnp_forward.1} parent=0 // pred_fallthru
    _
  // Predicated region
  $region6: #{hgnnp_forward.1} parent=0 // pred_check
    _
  $region7: #{hgnnp_forward.1} parent=0 // pred_check_branch
    %14 = sbr.rel (0) target = $region9
  $region8: #{hgnnp_forward.1} parent=0 // pred_region
    _
  $region9: #{hgnnp_forward.1} parent=0 // pred_fallthru
    _
  // Predicated region
  $region10: #{hgnnp_forward.1} parent=0 // pred_check
    _
  $region11: #{hgnnp_forward.1} parent=0 // pred_check_branch
    %16 = sbr.rel (0) target = $region13
  $region12: #{hgnnp_forward.1} parent=0 // pred_region
    _
  $region13: #{hgnnp_forward.1} parent=0 // pred_fallthru
    _
  // Predicated region
  $region14: #{hgnnp_forward.1} parent=0 // pred_check
    _
  $region15: #{hgnnp_forward.1} parent=0 // pred_check_branch
    %18 = sbr.rel (0) target = $region17
  $region16: #{hgnnp_forward.1} parent=0 // pred_region
    _
  $region17: #{hgnnp_forward.1} parent=0 // pred_fallthru
    _
  // Predicated region
  $region18: #{hgnnp_forward.1} parent=0 // pred_check
    _
  $region19: #{hgnnp_forward.1} parent=0 // pred_check_branch
    %20 = sbr.rel (0) target = $region21
  $region20: #{hgnnp_forward.1} parent=0 // pred_region
    _
  $region21: #{hgnnp_forward.1} parent=0 // pred_fallthru
    _
  // Predicated region
  $region22: #{hgnnp_forward.1} parent=0 // pred_check
    _
  $region23: #{hgnnp_forward.1} parent=0 // pred_check_branch
    %22 = sbr.rel (0) target = $region25
  $region24: #{hgnnp_forward.1} parent=0 // pred_region
    _
  $region25: #{hgnnp_forward.1} parent=0 // pred_fallthru
    _
  %v24 = vld [vmem:[%s0] sm:$0xf]
  %v25 = vld [vmem:[%s0 + $0x4] sm:$0xf]
  %v26 = vld [vmem:[%s2] sm:$0xf]
  %v27 = vld [vmem:[%s2 + $0x4] sm:$0xf]
  %v28 = vld [vmem:[%s2 + $0x8] sm:$0xf]
  %v29 = vld [vmem:[%s2 + $0xc] sm:$0xf]
  %v30 = vld [vmem:[%s2 + $0x10] sm:$0xf]
  %v31 = vld [vmem:[%s2 + $0x14] sm:$0xf]
  %v32 = vld [vmem:[%s2 + $0x18] sm:$0xf]
  %v33 = vld [vmem:[%s2 + $0x1c] sm:$0xf]
  %v34 = vld [vmem:[%s2 + $0x20] sm:$0xf]
  %v35 = vld [vmem:[%s2 + $0x24] sm:$0xf]
  %v36 = vld [vmem:[%s2 + $0x28] sm:$0xf]
  %v37 = vld [vmem:[%s2 + $0x2c] sm:$0xf]
  %v38 = vld [vmem:[%s2 + $0x30] sm:$0xf]
  %v39 = vld [vmem:[%s2 + $0x34] sm:$0xf]
  %v40 = vld [vmem:[%s2 + $0x38] sm:$0xf]
  %v41 = vld [vmem:[%s2 + $0x3c] sm:$0xf]
  %v42 = vld [vmem:[%s3] sm:$0x1]
  %v44 = vlaneseq
  %v45 = vshrl.u32 %v44, 7
  %v46 = vsub.s32 0, %v45
  %v47 = vrot.slane %v42, %v46
  %v51 = vunpack.c.l.b16 %v24
  %v52 = vunpack.c.l.b16 %v25
  %v53 = vpack.c.b16 %v52, %v51
  %v71 = vunpack.c.l.b16 %v26
  %v72 = vunpack.c.l.b16 %v27
  %v73 = vunpack.c.l.b16 %v28
  %v74 = vunpack.c.l.b16 %v29
  %v75 = vunpack.c.l.b16 %v30
  %v76 = vunpack.c.l.b16 %v31
  %v77 = vunpack.c.l.b16 %v32
  %v78 = vunpack.c.l.b16 %v33
  %v79 = vunpack.c.l.b16 %v34
  %v80 = vunpack.c.l.b16 %v35
  %v81 = vunpack.c.l.b16 %v36
  %v82 = vunpack.c.l.b16 %v37
  %v83 = vunpack.c.l.b16 %v38
  %v84 = vunpack.c.l.b16 %v39
  %v85 = vunpack.c.l.b16 %v40
  %v86 = vunpack.c.l.b16 %v41
  %v87 = vpack.c.b16 %v72, %v71
  %v88 = vpack.c.b16 %v74, %v73
  %v89 = vpack.c.b16 %v76, %v75
  %v90 = vpack.c.b16 %v78, %v77
  %v91 = vpack.c.b16 %v80, %v79
  %v92 = vpack.c.b16 %v82, %v81
  %v93 = vpack.c.b16 %v84, %v83
  %v94 = vpack.c.b16 %v86, %v85
  %103 = vmatprep.subr.bf16.mxu0 0
  %104 = vmatpush1.bf16.msra.mxu0 %v87
  %105 = vmatprep.subr.bf16.mxu0 0
  %106 = vmatpush1.bf16.msra.mxu0 %v88
  %107 = vmatprep.subr.bf16.mxu0 0
  %108 = vmatpush1.bf16.msra.mxu0 %v89
  %109 = vmatprep.subr.bf16.mxu0 0
  %110 = vmatpush1.bf16.msra.mxu0 %v90
  %111 = vmatprep.subr.bf16.mxu0 0
  %112 = vmatpush1.bf16.msra.mxu0 %v91
  %113 = vmatprep.subr.bf16.mxu0 0
  %114 = vmatpush1.bf16.msra.mxu0 %v92
  %115 = vmatprep.subr.bf16.mxu0 0
  %116 = vmatpush1.bf16.msra.mxu0 %v93
  %117 = vmatprep.subr.bf16.mxu0 0
  %118 = vmatpush1.bf16.msra.mxu0 %v94
  %119 = vmatprep.subr.bf16.mxu0 0
  %120 = vmatpush1.bf16.msra.mxu0 0
  %121 = vmatprep.subr.bf16.mxu0 0
  %122 = vmatpush1.bf16.msra.mxu0 0
  %123 = vmatprep.subr.bf16.mxu0 0
  %124 = vmatpush1.bf16.msra.mxu0 0
  %125 = vmatprep.subr.bf16.mxu0 0
  %126 = vmatpush1.bf16.msra.mxu0 0
  %127 = vmatprep.subr.bf16.mxu0 0
  %128 = vmatpush1.bf16.msra.mxu0 0
  %129 = vmatprep.subr.bf16.mxu0 0
  %130 = vmatpush1.bf16.msra.mxu0 0
  %131 = vmatprep.subr.bf16.mxu0 0
  %132 = vmatpush1.bf16.msra.mxu0 0
  %133 = vmatprep.subr.bf16.mxu0 0
  %134 = vmatpush1.bf16.msra.mxu0 0
  %135 = vmatprep.mubr.bf16.mxu0 0
  %136 = vmatmul.mubr.bf16.gmra.mrb[0].mxu0 %v53
  %v137 = vpop.f32.mrb[0].mxu0
  %v138 = vadd.f32 %v47, %v137
  %v139 = vpop.f32.mrb[0].mxu0
  %v140 = vpop.f32.mrb[0].mxu0
  %v141 = vadd.f32 %v47, %v140
  %v142 = vpop.f32.mrb[0].mxu0
  %143 = vdwg.mxu0
  %v144 = vld [vmem:[%s1] sm:$0xf]
  %v145 = vld [vmem:[%s1 + $0x4] sm:$0xf]
  %v146 = vpack.c.bf16 %v141, %v138
  %v149 = vunpack.c.l.b16 %v144
  %v150 = vunpack.c.l.b16 %v145
  %v151 = vpack.c.b16 %v150, %v149
  %vm152 = vcmask 130048
  %v154 = vsel %vm152, %v151, 0
  %156 = vmatprep.subr.bf16.mxu0 0
  %157 = vmatpush1.bf16.msra.mxu0 %v146
  %158 = vmatprep.subr.bf16.mxu0 0
  %159 = vmatpush1.bf16.msra.mxu0 0
  %160 = vmatprep.subr.bf16.mxu0 0
  %161 = vmatpush1.bf16.msra.mxu0 0
  %162 = vmatprep.subr.bf16.mxu0 0
  %163 = vmatpush1.bf16.msra.mxu0 0
  %164 = vmatprep.subr.bf16.mxu0 0
  %165 = vmatpush1.bf16.msra.mxu0 0
  %166 = vmatprep.subr.bf16.mxu0 0
  %167 = vmatpush1.bf16.msra.mxu0 0
  %168 = vmatprep.subr.bf16.mxu0 0
  %169 = vmatpush1.bf16.msra.mxu0 0
  %170 = vmatprep.subr.bf16.mxu0 0
  %171 = vmatpush1.bf16.msra.mxu0 0
  %172 = vmatprep.subr.bf16.mxu0 0
  %173 = vmatpush1.bf16.msra.mxu0 0
  %174 = vmatprep.subr.bf16.mxu0 0
  %175 = vmatpush1.bf16.msra.mxu0 0
  %176 = vmatprep.subr.bf16.mxu0 0
  %177 = vmatpush1.bf16.msra.mxu0 0
  %178 = vmatprep.subr.bf16.mxu0 0
  %179 = vmatpush1.bf16.msra.mxu0 0
  %180 = vmatprep.subr.bf16.mxu0 0
  %181 = vmatpush1.bf16.msra.mxu0 0
  %182 = vmatprep.subr.bf16.mxu0 0
  %183 = vmatpush1.bf16.msra.mxu0 0
  %184 = vmatprep.subr.bf16.mxu0 0
  %185 = vmatpush1.bf16.msra.mxu0 0
  %186 = vmatprep.subr.bf16.mxu0 0
  %187 = vmatpush1.bf16.msra.mxu0 0
  %188 = vmatprep.mubr.bf16.mxu0 0
  %189 = vmatmul.mubr.bf16.gmra.mrb[0].mxu0 %v154
  %v190 = vpop.f32.mrb[0].mxu0
  %v191 = vadd.f32 0.0, %v190
  %v192 = vpop.f32.mrb[0].mxu0
  %v193 = vpop.f32.mrb[0].mxu0
  %v194 = vadd.f32 0.0, %v193
  %v195 = vpop.f32.mrb[0].mxu0
  %196 = vdwg.mxu0
  %v197 = vmax.f32 %v191, 0.0
  %v198 = vmax.f32 %v194, 0.0
  %v199 = vpack.c.bf16 %v198, %v197
  %v200 = vld [vmem:[%s4] sm:$0xf]
  %v201 = vld [vmem:[%s4 + $0x4] sm:$0xf]
  %v202 = vld [vmem:[%s4 + $0x8] sm:$0xf]
  %v203 = vld [vmem:[%s4 + $0xc] sm:$0xf]
  %v204 = vld [vmem:[%s4 + $0x10] sm:$0xf]
  %v205 = vld [vmem:[%s4 + $0x14] sm:$0xf]
  %v206 = vld [vmem:[%s4 + $0x18] sm:$0xf]
  %v207 = vld [vmem:[%s4 + $0x1c] sm:$0xf]
  %v208 = vld [vmem:[%s4 + $0x20] sm:$0xf]
  %v209 = vld [vmem:[%s4 + $0x24] sm:$0xf]
  %v210 = vld [vmem:[%s4 + $0x28] sm:$0xf]
  %v211 = vld [vmem:[%s4 + $0x2c] sm:$0xf]
  %v212 = vld [vmem:[%s4 + $0x30] sm:$0xf]
  %v213 = vld [vmem:[%s4 + $0x34] sm:$0xf]
  %v214 = vld [vmem:[%s4 + $0x38] sm:$0xf]
  %v215 = vld [vmem:[%s4 + $0x3c] sm:$0xf]
  %v216 = vld [vmem:[%s5] sm:$0x1]
  %v218 = vlaneseq
  %v219 = vshrl.u32 %v218, 7
  %v220 = vsub.s32 0, %v219
  %v221 = vrot.slane %v216, %v220
  %v239 = vunpack.c.l.b16 %v200
  %v240 = vunpack.c.l.b16 %v201
  %v241 = vunpack.c.l.b16 %v202
  %v242 = vunpack.c.l.b16 %v203
  %v243 = vunpack.c.l.b16 %v204
  %v244 = vunpack.c.l.b16 %v205
  %v245 = vunpack.c.l.b16 %v206
  %v246 = vunpack.c.l.b16 %v207
  %v247 = vunpack.c.l.b16 %v208
  %v248 = vunpack.c.l.b16 %v209
  %v249 = vunpack.c.l.b16 %v210
  %v250 = vunpack.c.l.b16 %v211
  %v251 = vunpack.c.l.b16 %v212
  %v252 = vunpack.c.l.b16 %v213
  %v253 = vunpack.c.l.b16 %v214
  %v254 = vunpack.c.l.b16 %v215
  %v255 = vpack.c.b16 %v240, %v239
  %v256 = vpack.c.b16 %v242, %v241
  %v257 = vpack.c.b16 %v244, %v243
  %v258 = vpack.c.b16 %v246, %v245
  %v259 = vpack.c.b16 %v248, %v247
  %v260 = vpack.c.b16 %v250, %v249
  %v261 = vpack.c.b16 %v252, %v251
  %v262 = vpack.c.b16 %v254, %v253
  %271 = vmatprep.subr.bf16.mxu0 0
  %272 = vmatpush1.bf16.msra.mxu0 %v255
  %273 = vmatprep.subr.bf16.mxu0 0
  %274 = vmatpush1.bf16.msra.mxu0 %v256
  %275 = vmatprep.subr.bf16.mxu0 0
  %276 = vmatpush1.bf16.msra.mxu0 %v257
  %277 = vmatprep.subr.bf16.mxu0 0
  %278 = vmatpush1.bf16.msra.mxu0 %v258
  %279 = vmatprep.subr.bf16.mxu0 0
  %280 = vmatpush1.bf16.msra.mxu0 %v259
  %281 = vmatprep.subr.bf16.mxu0 0
  %282 = vmatpush1.bf16.msra.mxu0 %v260
  %283 = vmatprep.subr.bf16.mxu0 0
  %284 = vmatpush1.bf16.msra.mxu0 %v261
  %285 = vmatprep.subr.bf16.mxu0 0
  %286 = vmatpush1.bf16.msra.mxu0 %v262
  %287 = vmatprep.subr.bf16.mxu0 0
  %288 = vmatpush1.bf16.msra.mxu0 0
  %289 = vmatprep.subr.bf16.mxu0 0
  %290 = vmatpush1.bf16.msra.mxu0 0
  %291 = vmatprep.subr.bf16.mxu0 0
  %292 = vmatpush1.bf16.msra.mxu0 0
  %293 = vmatprep.subr.bf16.mxu0 0
  %294 = vmatpush1.bf16.msra.mxu0 0
  %295 = vmatprep.subr.bf16.mxu0 0
  %296 = vmatpush1.bf16.msra.mxu0 0
  %297 = vmatprep.subr.bf16.mxu0 0
  %298 = vmatpush1.bf16.msra.mxu0 0
  %299 = vmatprep.subr.bf16.mxu0 0
  %300 = vmatpush1.bf16.msra.mxu0 0
  %301 = vmatprep.subr.bf16.mxu0 0
  %302 = vmatpush1.bf16.msra.mxu0 0
  %303 = vmatprep.mubr.bf16.mxu0 0
  %304 = vmatmul.mubr.bf16.gmra.mrb[0].mxu0 %v199
  %v305 = vpop.f32.mrb[0].mxu0
  %v306 = vadd.f32 %v221, %v305
  %v307 = vpop.f32.mrb[0].mxu0
  %v308 = vpop.f32.mrb[0].mxu0
  %v309 = vadd.f32 %v221, %v308
  %v310 = vpop.f32.mrb[0].mxu0
  %311 = vdwg.mxu0
  %v312 = vpack.c.bf16 %v309, %v306
  %313 = vmatprep.subr.bf16.mxu0 0
  %314 = vmatpush1.bf16.msra.mxu0 %v312
  %315 = vmatprep.subr.bf16.mxu0 0
  %316 = vmatpush1.bf16.msra.mxu0 0
  %317 = vmatprep.subr.bf16.mxu0 0
  %318 = vmatpush1.bf16.msra.mxu0 0
  %319 = vmatprep.subr.bf16.mxu0 0
  %320 = vmatpush1.bf16.msra.mxu0 0
  %321 = vmatprep.subr.bf16.mxu0 0
  %322 = vmatpush1.bf16.msra.mxu0 0
  %323 = vmatprep.subr.bf16.mxu0 0
  %324 = vmatpush1.bf16.msra.mxu0 0
  %325 = vmatprep.subr.bf16.mxu0 0
  %326 = vmatpush1.bf16.msra.mxu0 0
  %327 = vmatprep.subr.bf16.mxu0 0
  %328 = vmatpush1.bf16.msra.mxu0 0
  %329 = vmatprep.subr.bf16.mxu0 0
  %330 = vmatpush1.bf16.msra.mxu0 0
  %331 = vmatprep.subr.bf16.mxu0 0
  %332 = vmatpush1.bf16.msra.mxu0 0
  %333 = vmatprep.subr.bf16.mxu0 0
  %334 = vmatpush1.bf16.msra.mxu0 0
  %335 = vmatprep.subr.bf16.mxu0 0
  %336 = vmatpush1.bf16.msra.mxu0 0
  %337 = vmatprep.subr.bf16.mxu0 0
  %338 = vmatpush1.bf16.msra.mxu0 0
  %339 = vmatprep.subr.bf16.mxu0 0
  %340 = vmatpush1.bf16.msra.mxu0 0
  %341 = vmatprep.subr.bf16.mxu0 0
  %342 = vmatpush1.bf16.msra.mxu0 0
  %343 = vmatprep.subr.bf16.mxu0 0
  %344 = vmatpush1.bf16.msra.mxu0 0
  %345 = vmatprep.mubr.bf16.mxu0 0
  %346 = vmatmul.mubr.bf16.gmra.mrb[0].mxu0 %v154
  %v347 = vpop.f32.mrb[0].mxu0
  %v348 = vadd.f32 0.0, %v347
  %v349 = vpop.f32.mrb[0].mxu0
  %v350 = vpop.f32.mrb[0].mxu0
  %v351 = vadd.f32 0.0, %v350
  %v352 = vpop.f32.mrb[0].mxu0
  %353 = vdwg.mxu0
  %354 = vst [vmem:[%s6] sm:$0xff] %v348
  %355 = vst [vmem:[%s6 + $0x8] sm:$0xff] %v351
  // Predicated region
  $region26: #{hgnnp_forward.1} parent=0 // pred_check
    _
  $region27: #{hgnnp_forward.1} parent=0 // pred_check_branch
    %357 = sbr.rel (0) target = $region29
  $region28: #{hgnnp_forward.1} parent=0 // pred_region
    _
  $region29: #{hgnnp_forward.1} parent=0 // pred_fallthru
    _
  // Predicated region
  $region30: #{hgnnp_forward.1} parent=0 // pred_check
    _
  $region31: #{hgnnp_forward.1} parent=0 // pred_check_branch
    %359 = sbr.rel (0) target = $region33
  $region32: #{hgnnp_forward.1} parent=0 // pred_region
    _
  $region33: #{hgnnp_forward.1} parent=0 // pred_fallthru
    _

</llo_original>
